<compile_context>
chip_gen: v7x
topology: tpu7x:2x2x1
jax: 0.10.0
libtpu: 0.0.40
codegen_flags: <defaults>
</compile_context>

<pallas_src>
import functools

import jax
import jax.numpy as jnp
from jax.experimental import pallas as pl
from jax.experimental.pallas import tpu as pltpu


def _round_up(x, m):
    return (x + m - 1) // m * m


# --------------------------------------------------------------------------
# Shared in-kernel math: x tile -> lane-dense f32 slab [adv | val | 0]
# --------------------------------------------------------------------------
def _mlp_slab(x_ref, wf_ref, bf_ref, w1_ref, b1_ref, w2_ref, b2_ref,
              compute_dtype):
    x = x_ref[...].astype(compute_dtype)          # per-tile cast (no-op in f32)
    # feature: Linear(num_inputs, 128) + ReLU    (f32 accumulate / elementwise)
    h = jnp.dot(x, wf_ref[...], preferred_element_type=jnp.float32) + bf_ref[...]
    h = jnp.maximum(h, 0.0).astype(compute_dtype)
    # fused hidden layer of both heads: Linear(128, 256) + ReLU
    hh = jnp.dot(h, w1_ref[...], preferred_element_type=jnp.float32) + b1_ref[...]
    hh = jnp.maximum(hh, 0.0).astype(compute_dtype)
    # fused block-diagonal output layer -> [adv | val | 0]
    return jnp.dot(hh, w2_ref[...], preferred_element_type=jnp.float32) + b2_ref[...]


def _value_col(slab, num_outputs):
    # extract the value column as a (tile_b, 1) lane reduce (XLU)
    cols = jax.lax.broadcasted_iota(jnp.int32, slab.shape, 1)
    return jnp.sum(jnp.where(cols == num_outputs, slab, 0.0),
                   axis=1, keepdims=True)


def _masked_adv_sum(slab, row_offset, batch, num_outputs):
    rows = jax.lax.broadcasted_iota(jnp.int32, slab.shape, 0) + row_offset
    cols = jax.lax.broadcasted_iota(jnp.int32, slab.shape, 1)
    valid = (rows < batch) & (cols < num_outputs)
    # select (not multiply) so garbage / NaN from padded rows never propagates
    return jnp.sum(jnp.where(valid, slab, 0.0))


# --------------------------------------------------------------------------
# Single-tile path: fully fused slab + global mean + q   (one pallas_call)
# --------------------------------------------------------------------------
def _fused_kernel(x_ref, wf_ref, bf_ref, w1_ref, b1_ref, w2_ref, b2_ref,
                  q_ref, *, batch, num_outputs, compute_dtype):
    slab = _mlp_slab(x_ref, wf_ref, bf_ref, w1_ref, b1_ref, w2_ref, b2_ref,
                     compute_dtype)
    mean = _masked_adv_sum(slab, 0, batch, num_outputs) * (
        1.0 / float(batch * num_outputs))
    q = slab + _value_col(slab, num_outputs) - mean
    q_ref[...] = q[:, : q_ref.shape[1]]           # narrow or lane-dense store


# --------------------------------------------------------------------------
# Multi-tile pass 1: per-tile partial advantage sums (tile-parallel, v7x-safe)
# --------------------------------------------------------------------------
def _partial_sum_kernel(x_ref, wf_ref, bf_ref, w1_ref, b1_ref, w2_ref, b2_ref,
                        psum_ref, *, batch, tile_b, num_outputs,
                        compute_dtype):
    i = pl.program_id(0)
    slab = _mlp_slab(x_ref, wf_ref, bf_ref, w1_ref, b1_ref, w2_ref, b2_ref,
                     compute_dtype)
    s = _masked_adv_sum(slab, i * tile_b, batch, num_outputs)
    psum_ref[...] = jnp.full(psum_ref.shape, s, jnp.float32)


# --------------------------------------------------------------------------
# Multi-tile pass 2: recompute slab, q = val + adv - mean, single q write
# --------------------------------------------------------------------------
def _finalize_kernel(mean_ref, x_ref, wf_ref, bf_ref, w1_ref, b1_ref, w2_ref,
                     b2_ref, q_ref, *, num_outputs, compute_dtype):
    slab = _mlp_slab(x_ref, wf_ref, bf_ref, w1_ref, b1_ref, w2_ref, b2_ref,
                     compute_dtype)
    q = slab + _value_col(slab, num_outputs) - mean_ref[0, 0]
    q_ref[...] = q[:, : q_ref.shape[1]]


# --------------------------------------------------------------------------
# One-time weight preparation (outside the per-call forward path)
# --------------------------------------------------------------------------
def prepare_params(params, *, compute_dtype=jnp.float32):
    """Fuse / pad / pre-cast the per-layer weights once."""
    H = params["wf"].shape[1]                     # 128
    O = params["wa2"].shape[1]                    # num_outputs
    OUT_W = max(128, _round_up(O + 1, 128))       # lane-dense slab width
    w2 = jnp.zeros((2 * H, OUT_W), jnp.float32)
    w2 = w2.at[:H, :O].set(params["wa2"])         # advantage block
    w2 = w2.at[H:, O].set(params["wv2"][:, 0])    # value column
    b2 = jnp.zeros((1, OUT_W), jnp.float32)
    b2 = b2.at[0, :O].set(params["ba2"][0])
    b2 = b2.at[0, O].set(params["bv2"][0, 0])
    return dict(
        wf=params["wf"].astype(compute_dtype),
        bf=params["bf"].astype(jnp.float32),
        w1=jnp.concatenate([params["wa1"], params["wv1"]],
                           axis=1).astype(compute_dtype),
        b1=jnp.concatenate([params["ba1"], params["bv1"]],
                           axis=1).astype(jnp.float32),
        w2=w2.astype(compute_dtype),
        b2=b2,                                    # biases stay f32
        num_outputs=int(O),
    )


# --------------------------------------------------------------------------
# Forward
# --------------------------------------------------------------------------
def dueling_dqn_forward(x, prep, *, max_tile_b=1024,
                        narrow_store_min_batch=256):
    """x: (B, num_inputs). prep: prepare_params(...). Returns (B, O) f32."""
    B, num_inputs = x.shape
    wf, bf, w1, b1, w2, b2 = (prep["wf"], prep["bf"], prep["w1"], prep["b1"],
                              prep["w2"], prep["b2"])
    O = prep["num_outputs"]
    OUT_W = w2.shape[1]
    compute_dtype = w2.dtype                      # matmul operand dtype

    TILE_B = min(_round_up(B, 8), max_tile_b)     # sublane-aligned batch tile
    num_tiles = pl.cdiv(B, TILE_B)                # partial last block allowed

    # lane-dense 128-wide q for small batches; O-column masked store once the
    # wasted write bandwidth (+ wrapper slice) would dominate.
    narrow = (O < OUT_W) and (B >= narrow_store_min_batch)
    q_cols = O if narrow else OUT_W

    weights = (wf, bf, w1, b1, w2, b2)

    def resident(a):                              # constant index_map ->
        zeros = (0,) * a.ndim                     # stays VMEM-resident
        return pl.BlockSpec(a.shape, lambda i, _z=zeros: _z)

    weight_specs = [resident(a) for a in weights]
    x_spec = pl.BlockSpec((TILE_B, num_inputs), lambda i: (i, 0))
    q_spec = pl.BlockSpec((TILE_B, q_cols), lambda i: (i, 0))
    q_shape = jax.ShapeDtypeStruct((B, q_cols), jnp.float32)

    if num_tiles == 1:
        # Fully fused single call: no slab HBM round-trip, no second launch.
        q = pl.pallas_call(
            functools.partial(_fused_kernel, batch=B, num_outputs=O,
                              compute_dtype=compute_dtype),
            grid=(1,),
            in_specs=[x_spec] + weight_specs,
            out_specs=q_spec,
            out_shape=q_shape,
        )(x, *weights)
    else:
        # Pass 1: per-tile partial advantage sums; distinct output blocks, so
        # the batch axis is "parallel" (v7x megacore splits the tiles).
        partials = pl.pallas_call(
            functools.partial(_partial_sum_kernel, batch=B, tile_b=TILE_B,
                              num_outputs=O, compute_dtype=compute_dtype),
            grid=(num_tiles,),
            in_specs=[x_spec] + weight_specs,
            out_specs=pl.BlockSpec((1, 8, 128), lambda i: (i, 0, 0)),
            out_shape=jax.ShapeDtypeStruct((num_tiles, 8, 128), jnp.float32),
            compiler_params=pltpu.CompilerParams(
                dimension_semantics=("parallel",)),
        )(x, *weights)
        adv_mean = (jnp.sum(partials[:, 0, 0]) / float(B * O)).reshape(1, 1)

        # Pass 2: recompute the cheap MLP (x is narrow; cheaper than a slab
        # round-trip) and write q exactly once, tile-parallel.
        q = pl.pallas_call(
            functools.partial(_finalize_kernel, num_outputs=O,
                              compute_dtype=compute_dtype),
            grid=(num_tiles,),
            in_specs=[pl.BlockSpec(memory_space=pltpu.MemorySpace.SMEM),
                      x_spec] + weight_specs,
            out_specs=q_spec,
            out_shape=q_shape,
            compiler_params=pltpu.CompilerParams(
                dimension_semantics=("parallel",)),
        )(adv_mean, x, *weights)

    return q if narrow else q[:, :O]


# --------------------------------------------------------------------------
# Raw parameters and pure-JAX reference
# --------------------------------------------------------------------------
def init_params(key, num_inputs, num_outputs, hidden=128):
    ks = jax.random.split(key, 10)

    def lin(kw, kb, fan_in, fan_out):
        # PyTorch-Linear-like uniform init, bound 1/sqrt(fan_in)
        bound = 1.0 / jnp.sqrt(jnp.float32(fan_in))
        w = jax.random.uniform(kw, (fan_in, fan_out), jnp.float32, -bound, bound)
        b = jax.random.uniform(kb, (1, fan_out), jnp.float32, -bound, bound)
        return w, b

    wf, bf = lin(ks[0], ks[1], num_inputs, hidden)
    wa1, ba1 = lin(ks[2], ks[3], hidden, hidden)
    wa2, ba2 = lin(ks[4], ks[5], hidden, num_outputs)
    wv1, bv1 = lin(ks[6], ks[7], hidden, hidden)
    wv2, bv2 = lin(ks[8], ks[9], hidden, 1)
    return dict(wf=wf, bf=bf, wa1=wa1, ba1=ba1, wa2=wa2, ba2=ba2,
                wv1=wv1, bv1=bv1, wv2=wv2, bv2=bv2)


def reference_forward(x, p):
    relu = lambda t: jnp.maximum(t, 0.0)
    h = relu(x @ p["wf"] + p["bf"])
    adv = relu(h @ p["wa1"] + p["ba1"]) @ p["wa2"] + p["ba2"]
    val = relu(h @ p["wv1"] + p["bv1"]) @ p["wv2"] + p["bv2"]
    return val + adv - jnp.mean(adv)


if __name__ == "__main__":
    key = jax.random.PRNGKey(0)
    k_p, k_x1, k_x2 = jax.random.split(key, 3)

    num_inputs, num_outputs = 32, 8
    raw = init_params(k_p, num_inputs, num_outputs)
    prep = prepare_params(raw)                    # fuse / pad weights once

    # Small case (batch=2): single fused call, lane-dense output, partial block.
    x_small = jax.random.normal(k_x1, (2, num_inputs), dtype=jnp.float32)
    out_small = jax.block_until_ready(dueling_dqn_forward(x_small, prep))
    ref_small = reference_forward(x_small, raw)
    assert out_small.shape == (2, num_outputs)
    assert jnp.allclose(out_small, ref_small, atol=1e-3, rtol=1e-3)

    # Medium case (batch=300): still one fused call (tile 304), narrow q store.
    x_mid = jax.random.normal(k_x2, (300, num_inputs), dtype=jnp.float32)
    out_mid = jax.block_until_ready(dueling_dqn_forward(x_mid, prep))
    ref_mid = reference_forward(x_mid, raw)
    assert out_mid.shape == (300, num_outputs)
    assert jnp.allclose(out_mid, ref_mid, atol=1e-3, rtol=1e-3)

    # Force the multi-tile path at small shapes (3 tiles of 128 incl. a partial
    # last block): exercises the parallel partial-sum + finalize kernels and
    # the global-mean reduction without the explicit x padding.
    out_multi = jax.block_until_ready(
        dueling_dqn_forward(x_mid, prep, max_tile_b=128))
    assert out_multi.shape == (300, num_outputs)
    assert jnp.allclose(out_multi, ref_mid, atol=1e-3, rtol=1e-3)

    print("KERNEL_OK")
</pallas_src>

<mosaic_0001>
module attributes {stable_mosaic.version = 11 : i64} {
  func.func @_fused_kernel(%arg0: i32, %arg1: memref<8x32xf32, #tpu.memory_space<vmem>>, %arg2: memref<32x128xf32, #tpu.memory_space<vmem>>, %arg3: memref<1x128xf32, #tpu.memory_space<vmem>>, %arg4: memref<128x256xf32, #tpu.memory_space<vmem>>, %arg5: memref<1x256xf32, #tpu.memory_space<vmem>>, %arg6: memref<256x128xf32, #tpu.memory_space<vmem>>, %arg7: memref<1x128xf32, #tpu.memory_space<vmem>>, %arg8: memref<8x128xf32, #tpu.memory_space<vmem>>) attributes {dimension_semantics = [#tpu.dimension_semantics<arbitrary>], iteration_bounds = array<i64: 1>, scalar_prefetch = 0 : i64, scratch_operands = 0 : i64, tpu.core_type = #tpu.core_type<tc>, window_params = [{transform_indices = @transform_0, window_bounds = array<i64: 8, 32>}, {pipeline_mode = #tpu.pipeline_mode<synchronous>, transform_indices = @transform_1, window_bounds = array<i64: 32, 128>}, {pipeline_mode = #tpu.pipeline_mode<synchronous>, transform_indices = @transform_2, window_bounds = array<i64: 1, 128>}, {pipeline_mode = #tpu.pipeline_mode<synchronous>, transform_indices = @transform_3, window_bounds = array<i64: 128, 256>}, {pipeline_mode = #tpu.pipeline_mode<synchronous>, transform_indices = @transform_4, window_bounds = array<i64: 1, 256>}, {pipeline_mode = #tpu.pipeline_mode<synchronous>, transform_indices = @transform_5, window_bounds = array<i64: 256, 128>}, {pipeline_mode = #tpu.pipeline_mode<synchronous>, transform_indices = @transform_6, window_bounds = array<i64: 1, 128>}, {transform_indices = @transform_7, window_bounds = array<i64: 8, 128>}]} {
    %c0 = arith.constant 0 : index
    %c0_0 = arith.constant 0 : index
    %0 = vector.load %arg1[%c0, %c0_0] : memref<8x32xf32, #tpu.memory_space<vmem>>, vector<8x32xf32>
    %c0_1 = arith.constant 0 : index
    %c0_2 = arith.constant 0 : index
    %1 = vector.load %arg2[%c0_1, %c0_2] : memref<32x128xf32, #tpu.memory_space<vmem>>, vector<32x128xf32>
    %cst = arith.constant dense<0.000000e+00> : vector<8x128xf32>
    %2 = tpu.matmul %0, %1, %cst {dimension_numbers = #tpu.dot_dimension_numbers<[1], [0], [0], [1], [0, 0, 1, 1], [], []>} : vector<8x32xf32>, vector<32x128xf32>, vector<8x128xf32> -> vector<8x128xf32>
    %c0_3 = arith.constant 0 : index
    %c0_4 = arith.constant 0 : index
    %3 = vector.load %arg3[%c0_3, %c0_4] : memref<1x128xf32, #tpu.memory_space<vmem>>, vector<1x128xf32>
    %4 = vector.broadcast %3 : vector<1x128xf32> to vector<8x128xf32>
    %5 = arith.addf %2, %4 : vector<8x128xf32>
    %cst_5 = arith.constant 0.000000e+00 : f32
    %6 = vector.broadcast %cst_5 : f32 to vector<8x128xf32>
    %7 = arith.maximumf %5, %6 : vector<8x128xf32>
    %c0_6 = arith.constant 0 : index
    %c0_7 = arith.constant 0 : index
    %8 = vector.load %arg4[%c0_6, %c0_7] : memref<128x256xf32, #tpu.memory_space<vmem>>, vector<128x256xf32>
    %cst_8 = arith.constant dense<0.000000e+00> : vector<8x256xf32>
    %9 = tpu.matmul %7, %8, %cst_8 {dimension_numbers = #tpu.dot_dimension_numbers<[1], [0], [0], [1], [0, 0, 1, 1], [], []>} : vector<8x128xf32>, vector<128x256xf32>, vector<8x256xf32> -> vector<8x256xf32>
    %c0_9 = arith.constant 0 : index
    %c0_10 = arith.constant 0 : index
    %10 = vector.load %arg5[%c0_9, %c0_10] : memref<1x256xf32, #tpu.memory_space<vmem>>, vector<1x256xf32>
    %11 = vector.broadcast %10 : vector<1x256xf32> to vector<8x256xf32>
    %12 = arith.addf %9, %11 : vector<8x256xf32>
    %cst_11 = arith.constant 0.000000e+00 : f32
    %13 = vector.broadcast %cst_11 : f32 to vector<8x256xf32>
    %14 = arith.maximumf %12, %13 : vector<8x256xf32>
    %c0_12 = arith.constant 0 : index
    %c0_13 = arith.constant 0 : index
    %15 = vector.load %arg6[%c0_12, %c0_13] : memref<256x128xf32, #tpu.memory_space<vmem>>, vector<256x128xf32>
    %cst_14 = arith.constant dense<0.000000e+00> : vector<8x128xf32>
    %16 = tpu.matmul %14, %15, %cst_14 {dimension_numbers = #tpu.dot_dimension_numbers<[1], [0], [0], [1], [0, 0, 1, 1], [], []>} : vector<8x256xf32>, vector<256x128xf32>, vector<8x128xf32> -> vector<8x128xf32>
    %c0_15 = arith.constant 0 : index
    %c0_16 = arith.constant 0 : index
    %17 = vector.load %arg7[%c0_15, %c0_16] : memref<1x128xf32, #tpu.memory_space<vmem>>, vector<1x128xf32>
    %18 = vector.broadcast %17 : vector<1x128xf32> to vector<8x128xf32>
    %19 = arith.addf %16, %18 : vector<8x128xf32>
    %20 = tpu.iota {dimensions = array<i32: 0>} : vector<8x128xi32>
    %c0_i32 = arith.constant 0 : i32
    %21 = vector.broadcast %c0_i32 : i32 to vector<8x128xi32>
    %22 = arith.addi %20, %21 : vector<8x128xi32>
    %23 = tpu.iota {dimensions = array<i32: 1>} : vector<8x128xi32>
    %c2_i32 = arith.constant 2 : i32
    %24 = vector.broadcast %c2_i32 : i32 to vector<8x128xi32>
    %25 = arith.cmpi slt, %22, %24 : vector<8x128xi32>
    %c8_i32 = arith.constant 8 : i32
    %26 = vector.broadcast %c8_i32 : i32 to vector<8x128xi32>
    %27 = arith.cmpi slt, %23, %26 : vector<8x128xi32>
    %28 = arith.andi %25, %27 : vector<8x128xi1>
    %cst_17 = arith.constant 0.000000e+00 : f32
    %29 = vector.broadcast %cst_17 : f32 to vector<8x128xf32>
    %30 = arith.select %28, %19, %29 : vector<8x128xi1>, vector<8x128xf32>
    %31 = vector.shape_cast %30 : vector<8x128xf32> to vector<1x8x128xf32>
    %cst_18 = arith.constant dense<0.000000e+00> : vector<1xf32>
    %32 = vector.multi_reduction <add>, %31, %cst_18 [1, 2] : vector<1x8x128xf32> to vector<1xf32>
    %33 = vector.shape_cast %32 : vector<1xf32> to vector<1x1x1xf32>
    %34 = vector.extract %33[0, 0, 0] : f32 from vector<1x1x1xf32>
    %cst_19 = arith.constant 6.250000e-02 : f32
    %35 = arith.mulf %34, %cst_19 : f32
    %36 = tpu.iota {dimensions = array<i32: 1>} : vector<8x128xi32>
    %c8_i32_20 = arith.constant 8 : i32
    %37 = vector.broadcast %c8_i32_20 : i32 to vector<8x128xi32>
    %38 = arith.cmpi eq, %36, %37 : vector<8x128xi32>
    %cst_21 = arith.constant 0.000000e+00 : f32
    %39 = vector.broadcast %cst_21 : f32 to vector<8x128xf32>
    %40 = arith.select %38, %19, %39 : vector<8x128xi1>, vector<8x128xf32>
    %cst_22 = arith.constant dense<0.000000e+00> : vector<8xf32>
    %41 = vector.multi_reduction <add>, %40, %cst_22 [1] : vector<8x128xf32> to vector<8xf32>
    %42 = vector.shape_cast %41 : vector<8xf32> to vector<8x1xf32>
    %43 = vector.broadcast %42 : vector<8x1xf32> to vector<8x128xf32>
    %44 = arith.addf %19, %43 : vector<8x128xf32>
    %45 = vector.broadcast %35 : f32 to vector<8x128xf32>
    %46 = arith.subf %44, %45 : vector<8x128xf32>
    %c0_23 = arith.constant 0 : index
    %c0_24 = arith.constant 0 : index
    %47 = vector.load %arg8[%c0_23, %c0_24] : memref<8x128xf32, #tpu.memory_space<vmem>>, vector<8x128xf32>
    tpu.vector_store %arg8[%c0_23, %c0_24], %46 {strides = array<i32>} : memref<8x128xf32, #tpu.memory_space<vmem>>, vector<8x128xf32>,
    return
  }
  func.func @transform_0(%arg0: i32) -> (i32, i32) {
    %c0_i32 = arith.constant 0 : i32
    %c0_i32_0 = arith.constant 0 : i32
    return %arg0, %c0_i32 : i32, i32
  }
  func.func @transform_1(%arg0: i32) -> (i32, i32) {
    %c0_i32 = arith.constant 0 : i32
    %c0_i32_0 = arith.constant 0 : i32
    %c0_i32_1 = arith.constant 0 : i32
    return %c0_i32, %c0_i32_0 : i32, i32
  }
  func.func @transform_2(%arg0: i32) -> (i32, i32) {
    %c0_i32 = arith.constant 0 : i32
    %c0_i32_0 = arith.constant 0 : i32
    %c0_i32_1 = arith.constant 0 : i32
    return %c0_i32, %c0_i32_0 : i32, i32
  }
  func.func @transform_3(%arg0: i32) -> (i32, i32) {
    %c0_i32 = arith.constant 0 : i32
    %c0_i32_0 = arith.constant 0 : i32
    %c0_i32_1 = arith.constant 0 : i32
    return %c0_i32, %c0_i32_0 : i32, i32
  }
  func.func @transform_4(%arg0: i32) -> (i32, i32) {
    %c0_i32 = arith.constant 0 : i32
    %c0_i32_0 = arith.constant 0 : i32
    %c0_i32_1 = arith.constant 0 : i32
    return %c0_i32, %c0_i32_0 : i32, i32
  }
  func.func @transform_5(%arg0: i32) -> (i32, i32) {
    %c0_i32 = arith.constant 0 : i32
    %c0_i32_0 = arith.constant 0 : i32
    %c0_i32_1 = arith.constant 0 : i32
    return %c0_i32, %c0_i32_0 : i32, i32
  }
  func.func @transform_6(%arg0: i32) -> (i32, i32) {
    %c0_i32 = arith.constant 0 : i32
    %c0_i32_0 = arith.constant 0 : i32
    %c0_i32_1 = arith.constant 0 : i32
    return %c0_i32, %c0_i32_0 : i32, i32
  }
  func.func @transform_7(%arg0: i32) -> (i32, i32) {
    %c0_i32 = arith.constant 0 : i32
    %c0_i32_0 = arith.constant 0 : i32
    return %arg0, %c0_i32 : i32, i32
  }
}

</mosaic_0001>

<llo_original>
// kernel: tpu_custom_call.1
$region0: #{tpu_custom_call.1}
  #allocation0 [shape = 'u32[]', space=smem, size = 0x4, offset = 0x4, fixed_abs, tag = 'smem constant byte address 0x4 - core index']
  #allocation1 [shape = 'u32[144,128]{1,0:T(1,128)}', space=vmem, size = 0x12000, scoped, tag = 'internal scratch']
  %s0 = inlined_call_operand.hbm [shape: f32[2,32], index: 0, kind: input, shape index: {}]
  %s1 = inlined_call_operand.hbm [shape: f32[32,128], index: 1, kind: input, shape index: {}]
  %s2 = inlined_call_operand.vmem [shape: f32[1,128], index: 2, kind: input, shape index: {}]
  %s3 = inlined_call_operand.hbm [shape: f32[128,256], index: 3, kind: input, shape index: {}]
  %s4 = inlined_call_operand.vmem [shape: f32[1,256], index: 4, kind: input, shape index: {}]
  %s5 = inlined_call_operand.hbm [shape: f32[256,128], index: 5, kind: input, shape index: {}]
  %s6 = inlined_call_operand.vmem [shape: f32[1,128], index: 6, kind: input, shape index: {}]
  %s7 = inlined_call_operand.hbm [shape: f32[2,128], index: 7, kind: output, shape index: {}]
  %s8 = sld [smem:[#allocation0]]
  $region54: #{tpu_custom_call.1} parent=0
    _
  %s10 = ssub.s32 1, %s8
  %s11 = scalar_select 0, %s10, %s8
  $region1: #{tpu_custom_call.1} parent=0
    #allocation2 [shape = 'u8[4096]{0}', space=vmem, size = 0x1000, scoped, tag = 'input window, operand 0, single buffered']
    #allocation3 [shape = 's32[1]{0}', space=sflag, size = 0x4, scoped, tag = 'scoped memory for tpu_custom_call.1']
    #allocation4 [shape = 's32[1]{0}', space=sflag, size = 0x4, scoped, tag = 'scoped memory for tpu_custom_call.1']
    #allocation5 [shape = 'u8[16384]{0}', space=vmem, size = 0x4000, scoped, tag = 'input window, operand 1, single buffered']
    #allocation6 [shape = 's32[1]{0}', space=sflag, size = 0x4, scoped, tag = 'scoped memory for tpu_custom_call.1']
    #allocation7 [shape = 'u8[131072]{0}', space=vmem, size = 0x20000, scoped, tag = 'input window, operand 3, single buffered']
    #allocation8 [shape = 'u8[131072]{0}', space=vmem, size = 0x20000, scoped, tag = 'input window, operand 5, single buffered']
    #allocation9 [shape = 's32[1]{0}', space=sflag, size = 0x4, scoped, tag = 'scoped memory for tpu_custom_call.1']
    #allocation10 [shape = 'u8[4096]{0}', space=vmem, size = 0x1000, scoped, tag = 'output window, operand 0, single buffered']
    %12 = vsyncpa [#allocation3], 0
    %13 = vsyncpa [#allocation6], 0
    %14 = vsyncpa [#allocation9], 0
    %15 = vsyncpa [#allocation4], 0
    // Predicated region
    $region2: #{tpu_custom_call.1} parent=1 // pred_check
      _
    $region3: #{tpu_custom_call.1} parent=1 // pred_check_branch
      %17 = sbr.rel (0) target = $region5
    $region4: #{tpu_custom_call.1} parent=1 // pred_region
      %s19 = ssub.s32 128, 32
      %20 = vsyncadd [#allocation3], %s19
      %s21 = sshll.u32 [#allocation2], 4
      %s22 = int_to_ptr.vmem [resolvable:$true] %s21
      %27 = dma.hbm_to_vmem [thread:$0]  %s0, 32, %s22, [#allocation3], 32, 32, 2
    $region5: #{tpu_custom_call.1} parent=1 // pred_fallthru
      _
    // Predicated region
    $region6: #{tpu_custom_call.1} parent=1 // pred_check
      _
    $region7: #{tpu_custom_call.1} parent=1 // pred_check_branch
      %29 = sbr.rel (0) target = $region9
    $region8: #{tpu_custom_call.1} parent=1 // pred_region
      %s31 = ssub.s32 512, 512
      %32 = vsyncadd [#allocation6], %s31
      %s33 = sshll.u32 [#allocation5], 4
      %s34 = int_to_ptr.vmem [resolvable:$true] %s33
      %39 = dma.hbm_to_vmem [thread:$0]  %s1, 512, %s34, [#allocation6], 128, 128, 8
    $region9: #{tpu_custom_call.1} parent=1 // pred_fallthru
      _
    // Predicated region
    $region10: #{tpu_custom_call.1} parent=1 // pred_check
      _
    $region11: #{tpu_custom_call.1} parent=1 // pred_check_branch
      %41 = sbr.rel (0) target = $region13
    $region12: #{tpu_custom_call.1} parent=1 // pred_region
      _
    $region13: #{tpu_custom_call.1} parent=1 // pred_fallthru
      _
    // Predicated region
    $region14: #{tpu_custom_call.1} parent=1 // pred_check
      _
    $region15: #{tpu_custom_call.1} parent=1 // pred_check_branch
      %43 = sbr.rel (0) target = $region17
    $region16: #{tpu_custom_call.1} parent=1 // pred_region
      %s45 = ssub.s32 4096, 4096
      %46 = vsyncadd [#allocation6], %s45
      %s47 = sshll.u32 [#allocation7], 4
      %s48 = int_to_ptr.vmem [resolvable:$true] %s47
      %53 = dma.hbm_to_vmem [thread:$0]  %s3, 4096, %s48, [#allocation6], 256, 256, 16
    $region17: #{tpu_custom_call.1} parent=1 // pred_fallthru
      _
    // Predicated region
    $region18: #{tpu_custom_call.1} parent=1 // pred_check
      _
    $region19: #{tpu_custom_call.1} parent=1 // pred_check_branch
      %55 = sbr.rel (0) target = $region21
    $region20: #{tpu_custom_call.1} parent=1 // pred_region
      _
    $region21: #{tpu_custom_call.1} parent=1 // pred_fallthru
      _
    // Predicated region
    $region22: #{tpu_custom_call.1} parent=1 // pred_check
      _
    $region23: #{tpu_custom_call.1} parent=1 // pred_check_branch
      %57 = sbr.rel (0) target = $region25
    $region24: #{tpu_custom_call.1} parent=1 // pred_region
      %s59 = ssub.s32 4096, 4096
      %60 = vsyncadd [#allocation9], %s59
      %s61 = sshll.u32 [#allocation8], 4
      %s62 = int_to_ptr.vmem [resolvable:$true] %s61
      %67 = dma.hbm_to_vmem [thread:$0]  %s5, 4096, %s62, [#allocation9], 128, 128, 8
    $region25: #{tpu_custom_call.1} parent=1 // pred_fallthru
      _
    // Predicated region
    $region26: #{tpu_custom_call.1} parent=1 // pred_check
      _
    $region27: #{tpu_custom_call.1} parent=1 // pred_check_branch
      %69 = sbr.rel (0) target = $region29
    $region28: #{tpu_custom_call.1} parent=1 // pred_region
      _
    $region29: #{tpu_custom_call.1} parent=1 // pred_fallthru
      _
    // Predicated region
    $region30: #{tpu_custom_call.1} parent=1 // pred_check
      _
    $region31: #{tpu_custom_call.1} parent=1 // pred_check_branch
      %71 = sbr.rel (0) target = $region33
    $region32: #{tpu_custom_call.1} parent=1 // pred_region
      %72 = dma.done [#allocation3], 128
    $region33: #{tpu_custom_call.1} parent=1 // pred_fallthru
      _
    // Predicated region
    $region34: #{tpu_custom_call.1} parent=1 // pred_check
      _
    $region35: #{tpu_custom_call.1} parent=1 // pred_check_branch
      %74 = sbr.rel (0) target = $region37
    $region36: #{tpu_custom_call.1} parent=1 // pred_region
      %75 = dma.done [#allocation6], 512
    $region37: #{tpu_custom_call.1} parent=1 // pred_fallthru
      _
    // Predicated region
    $region38: #{tpu_custom_call.1} parent=1 // pred_check
      _
    $region39: #{tpu_custom_call.1} parent=1 // pred_check_branch
      %77 = sbr.rel (0) target = $region41
    $region40: #{tpu_custom_call.1} parent=1 // pred_region
      %78 = dma.done [#allocation6], 4096
    $region41: #{tpu_custom_call.1} parent=1 // pred_fallthru
      _
    // Predicated region
    $region42: #{tpu_custom_call.1} parent=1 // pred_check
      _
    $region43: #{tpu_custom_call.1} parent=1 // pred_check_branch
      %80 = sbr.rel (0) target = $region45
    $region44: #{tpu_custom_call.1} parent=1 // pred_region
      %81 = dma.done [#allocation9], 4096
    $region45: #{tpu_custom_call.1} parent=1 // pred_fallthru
      _
    %v82 = vld [vmem:[#allocation2] sm:$0xff]
    %v83 = vld [vmem:[#allocation5] sm:$0xff]
    %v84 = vld [vmem:[#allocation5 + $0x8] sm:$0xff]
    %v85 = vld [vmem:[#allocation5 + $0x10] sm:$0xff]
    %v86 = vld [vmem:[#allocation5 + $0x18] sm:$0xff]
    %v87 = vld [vmem:[%s2] sm:$0x1]
    %v89 = vlaneseq
    %v90 = vshrl.u32 %v89, 7
    %v91 = vsub.s32 0, %v90
    %v92 = vrot.slane %v87, %v91
    %vm94 = vcmask 261120
    %v96 = vsel %vm94, %v82, 0
    %98 = vmatprep.subr.mxu0 0.0
    %99 = vmatpush1.msra.mxu0 %v83
    %100 = vmatprep.subr.mxu0 0.0
    %101 = vmatpush1.msra.mxu0 %v84
    %102 = vmatprep.subr.mxu0 0.0
    %103 = vmatpush1.msra.mxu0 %v85
    %104 = vmatprep.subr.mxu0 0.0
    %105 = vmatpush1.msra.mxu0 %v86
    %106 = vmatprep.subr.mxu0 0.0
    %107 = vmatpush1.msra.mxu0 0.0
    %108 = vmatprep.subr.mxu0 0.0
    %109 = vmatpush1.msra.mxu0 0.0
    %110 = vmatprep.subr.mxu0 0.0
    %111 = vmatpush1.msra.mxu0 0.0
    %112 = vmatprep.subr.mxu0 0.0
    %113 = vmatpush1.msra.mxu0 0.0
    %114 = vmatprep.subr.mxu0 0.0
    %115 = vmatpush1.msra.mxu0 0.0
    %116 = vmatprep.subr.mxu0 0.0
    %117 = vmatpush1.msra.mxu0 0.0
    %118 = vmatprep.subr.mxu0 0.0
    %119 = vmatpush1.msra.mxu0 0.0
    %120 = vmatprep.subr.mxu0 0.0
    %121 = vmatpush1.msra.mxu0 0.0
    %122 = vmatprep.subr.mxu0 0.0
    %123 = vmatpush1.msra.mxu0 0.0
    %124 = vmatprep.subr.mxu0 0.0
    %125 = vmatpush1.msra.mxu0 0.0
    %126 = vmatprep.subr.mxu0 0.0
    %127 = vmatpush1.msra.mxu0 0.0
    %128 = vmatprep.subr.mxu0 0.0
    %129 = vmatpush1.msra.mxu0 0.0
    %130 = vmatprep.subr.mxu0 0.0
    %131 = vmatpush1.msra.mxu0 0.0
    %132 = vmatprep.subr.mxu0 0.0
    %133 = vmatpush1.msra.mxu0 0.0
    %134 = vmatprep.subr.mxu0 0.0
    %135 = vmatpush1.msra.mxu0 0.0
    %136 = vmatprep.subr.mxu0 0.0
    %137 = vmatpush1.msra.mxu0 0.0
    %138 = vmatprep.subr.mxu0 0.0
    %139 = vmatpush1.msra.mxu0 0.0
    %140 = vmatprep.subr.mxu0 0.0
    %141 = vmatpush1.msra.mxu0 0.0
    %142 = vmatprep.subr.mxu0 0.0
    %143 = vmatpush1.msra.mxu0 0.0
    %144 = vmatprep.subr.mxu0 0.0
    %145 = vmatpush1.msra.mxu0 0.0
    %146 = vmatprep.subr.mxu0 0.0
    %147 = vmatpush1.msra.mxu0 0.0
    %148 = vmatprep.subr.mxu0 0.0
    %149 = vmatpush1.msra.mxu0 0.0
    %150 = vmatprep.subr.mxu0 0.0
    %151 = vmatpush1.msra.mxu0 0.0
    %152 = vmatprep.subr.mxu0 0.0
    %153 = vmatpush1.msra.mxu0 0.0
    %154 = vmatprep.subr.mxu0 0.0
    %155 = vmatpush1.msra.mxu0 0.0
    %156 = vmatprep.subr.mxu0 0.0
    %157 = vmatpush1.msra.mxu0 0.0
    %158 = vmatprep.subr.mxu0 0.0
    %159 = vmatpush1.msra.mxu0 0.0
    %160 = vmatprep.subr.mxu0 0.0
    %161 = vmatpush1.msra.mxu0 0.0
    %162 = vmatprep.mubr.f32.mxu0 0.0
    %163 = vmatmul.mubr.f32.gmra.mrb[0].mxu0 %v96
    %v164 = vpop.f32.mrb[0].mxu0
    %v165 = vadd.f32 %v92, %v164
    %v166 = vpop.f32.mrb[0].mxu0
    %167 = vdwg.mxu0
    %v168 = vmax.f32 %v165, 0.0
    %v169 = vld [vmem:[#allocation7] sm:$0xff]
    %v170 = vld [vmem:[#allocation7 + $0x8] sm:$0xff]
    %v171 = vld [vmem:[#allocation7 + $0x10] sm:$0xff]
    %v172 = vld [vmem:[#allocation7 + $0x18] sm:$0xff]
    %v173 = vld [vmem:[#allocation7 + $0x20] sm:$0xff]
    %v174 = vld [vmem:[#allocation7 + $0x28] sm:$0xff]
    %v175 = vld [vmem:[#allocation7 + $0x30] sm:$0xff]
    %v176 = vld [vmem:[#allocation7 + $0x38] sm:$0xff]
    %v177 = vld [vmem:[#allocation7 + $0x40] sm:$0xff]
    %v178 = vld [vmem:[#allocation7 + $0x48] sm:$0xff]
    %v179 = vld [vmem:[#allocation7 + $0x50] sm:$0xff]
    %v180 = vld [vmem:[#allocation7 + $0x58] sm:$0xff]
    %v181 = vld [vmem:[#allocation7 + $0x60] sm:$0xff]
    %v182 = vld [vmem:[#allocation7 + $0x68] sm:$0xff]
    %v183 = vld [vmem:[#allocation7 + $0x70] sm:$0xff]
    %v184 = vld [vmem:[#allocation7 + $0x78] sm:$0xff]
    %v185 = vld [vmem:[#allocation7 + $0x80] sm:$0xff]
    %v186 = vld [vmem:[#allocation7 + $0x88] sm:$0xff]
    %v187 = vld [vmem:[#allocation7 + $0x90] sm:$0xff]
    %v188 = vld [vmem:[#allocation7 + $0x98] sm:$0xff]
    %v189 = vld [vmem:[#allocation7 + $0xa0] sm:$0xff]
    %v190 = vld [vmem:[#allocation7 + $0xa8] sm:$0xff]
    %v191 = vld [vmem:[#allocation7 + $0xb0] sm:$0xff]
    %v192 = vld [vmem:[#allocation7 + $0xb8] sm:$0xff]
    %v193 = vld [vmem:[#allocation7 + $0xc0] sm:$0xff]
    %v194 = vld [vmem:[#allocation7 + $0xc8] sm:$0xff]
    %v195 = vld [vmem:[#allocation7 + $0xd0] sm:$0xff]
    %v196 = vld [vmem:[#allocation7 + $0xd8] sm:$0xff]
    %v197 = vld [vmem:[#allocation7 + $0xe0] sm:$0xff]
    %v198 = vld [vmem:[#allocation7 + $0xe8] sm:$0xff]
    %v199 = vld [vmem:[#allocation7 + $0xf0] sm:$0xff]
    %v200 = vld [vmem:[#allocation7 + $0xf8] sm:$0xff]
    %v201 = vld [vmem:[%s4] sm:$0x3]
    %v203 = vlaneseq
    %v204 = vshrl.u32 %v203, 7
    %v205 = vsub.s32 0, %v204
    %v206 = vrot.slane %v201, %v205
    %v207 = vlaneseq
    %v208 = vshrl.u32 %v207, 7
    %v209 = vsub.s32 1, %v208
    %v210 = vrot.slane %v201, %v209
    %213 = vmatprep.subr.mxu0 %v170
    %214 = vmatpush1.msra.mxu0 %v169
    %215 = vmatprep.subr.mxu0 %v172
    %216 = vmatpush1.msra.mxu0 %v171
    %217 = vmatprep.subr.mxu0 %v174
    %218 = vmatpush1.msra.mxu0 %v173
    %219 = vmatprep.subr.mxu0 %v176
    %220 = vmatpush1.msra.mxu0 %v175
    %221 = vmatprep.subr.mxu0 %v178
    %222 = vmatpush1.msra.mxu0 %v177
    %223 = vmatprep.subr.mxu0 %v180
    %224 = vmatpush1.msra.mxu0 %v179
    %225 = vmatprep.subr.mxu0 %v182
    %226 = vmatpush1.msra.mxu0 %v181
    %227 = vmatprep.subr.mxu0 %v184
    %228 = vmatpush1.msra.mxu0 %v183
    %229 = vmatprep.subr.mxu0 %v186
    %230 = vmatpush1.msra.mxu0 %v185
    %231 = vmatprep.subr.mxu0 %v188
    %232 = vmatpush1.msra.mxu0 %v187
    %233 = vmatprep.subr.mxu0 %v190
    %234 = vmatpush1.msra.mxu0 %v189
    %235 = vmatprep.subr.mxu0 %v192
    %236 = vmatpush1.msra.mxu0 %v191
    %237 = vmatprep.subr.mxu0 %v194
    %238 = vmatpush1.msra.mxu0 %v193
    %239 = vmatprep.subr.mxu0 %v196
    %240 = vmatpush1.msra.mxu0 %v195
    %241 = vmatprep.subr.mxu0 %v198
    %242 = vmatpush1.msra.mxu0 %v197
    %243 = vmatprep.subr.mxu0 %v200
    %244 = vmatpush1.msra.mxu0 %v199
    %245 = vmatprep.subr.mxu0 0.0
    %246 = vmatpush1.msra.mxu0 0.0
    %247 = vmatprep.subr.mxu0 0.0
    %248 = vmatpush1.msra.mxu0 0.0
    %249 = vmatprep.subr.mxu0 0.0
    %250 = vmatpush1.msra.mxu0 0.0
    %251 = vmatprep.subr.mxu0 0.0
    %252 = vmatpush1.msra.mxu0 0.0
    %253 = vmatprep.subr.mxu0 0.0
    %254 = vmatpush1.msra.mxu0 0.0
    %255 = vmatprep.subr.mxu0 0.0
    %256 = vmatpush1.msra.mxu0 0.0
    %257 = vmatprep.subr.mxu0 0.0
    %258 = vmatpush1.msra.mxu0 0.0
    %259 = vmatprep.subr.mxu0 0.0
    %260 = vmatpush1.msra.mxu0 0.0
    %261 = vmatprep.subr.mxu0 0.0
    %262 = vmatpush1.msra.mxu0 0.0
    %263 = vmatprep.subr.mxu0 0.0
    %264 = vmatpush1.msra.mxu0 0.0
    %265 = vmatprep.subr.mxu0 0.0
    %266 = vmatpush1.msra.mxu0 0.0
    %267 = vmatprep.subr.mxu0 0.0
    %268 = vmatpush1.msra.mxu0 0.0
    %269 = vmatprep.subr.mxu0 0.0
    %270 = vmatpush1.msra.mxu0 0.0
    %271 = vmatprep.subr.mxu0 0.0
    %272 = vmatpush1.msra.mxu0 0.0
    %273 = vmatprep.subr.mxu0 0.0
    %274 = vmatpush1.msra.mxu0 0.0
    %275 = vmatprep.subr.mxu0 0.0
    %276 = vmatpush1.msra.mxu0 0.0
    %277 = vmatprep.mubr.f32.mxu0 0.0
    %278 = vmatmul.mubr.f32.gmra.mrb[0].mxu0 %v168
    %v279 = vpop.f32.mrb[0].mxu0
    %v280 = vadd.f32 %v206, %v279
    %v281 = vpop.f32.mrb[0].mxu0
    %v282 = vadd.f32 %v210, %v281
    %283 = vdwg.mxu0
    %v284 = vmax.f32 %v280, 0.0
    %v285 = vmax.f32 %v282, 0.0
    %v286 = vld [vmem:[#allocation8] sm:$0xff]
    %v287 = vld [vmem:[#allocation8 + $0x8] sm:$0xff]
    %v288 = vld [vmem:[#allocation8 + $0x10] sm:$0xff]
    %v289 = vld [vmem:[#allocation8 + $0x18] sm:$0xff]
    %v290 = vld [vmem:[#allocation8 + $0x20] sm:$0xff]
    %v291 = vld [vmem:[#allocation8 + $0x28] sm:$0xff]
    %v292 = vld [vmem:[#allocation8 + $0x30] sm:$0xff]
    %v293 = vld [vmem:[#allocation8 + $0x38] sm:$0xff]
    %v294 = vld [vmem:[#allocation8 + $0x40] sm:$0xff]
    %v295 = vld [vmem:[#allocation8 + $0x48] sm:$0xff]
    %v296 = vld [vmem:[#allocation8 + $0x50] sm:$0xff]
    %v297 = vld [vmem:[#allocation8 + $0x58] sm:$0xff]
    %v298 = vld [vmem:[#allocation8 + $0x60] sm:$0xff]
    %v299 = vld [vmem:[#allocation8 + $0x68] sm:$0xff]
    %v300 = vld [vmem:[#allocation8 + $0x70] sm:$0xff]
    %v301 = vld [vmem:[#allocation8 + $0x78] sm:$0xff]
    %v302 = vld [vmem:[#allocation8 + $0x80] sm:$0xff]
    %v303 = vld [vmem:[#allocation8 + $0x88] sm:$0xff]
    %v304 = vld [vmem:[#allocation8 + $0x90] sm:$0xff]
    %v305 = vld [vmem:[#allocation8 + $0x98] sm:$0xff]
    %v306 = vld [vmem:[#allocation8 + $0xa0] sm:$0xff]
    %v307 = vld [vmem:[#allocation8 + $0xa8] sm:$0xff]
    %v308 = vld [vmem:[#allocation8 + $0xb0] sm:$0xff]
    %v309 = vld [vmem:[#allocation8 + $0xb8] sm:$0xff]
    %v310 = vld [vmem:[#allocation8 + $0xc0] sm:$0xff]
    %v311 = vld [vmem:[#allocation8 + $0xc8] sm:$0xff]
    %v312 = vld [vmem:[#allocation8 + $0xd0] sm:$0xff]
    %v313 = vld [vmem:[#allocation8 + $0xd8] sm:$0xff]
    %v314 = vld [vmem:[#allocation8 + $0xe0] sm:$0xff]
    %v315 = vld [vmem:[#allocation8 + $0xe8] sm:$0xff]
    %v316 = vld [vmem:[#allocation8 + $0xf0] sm:$0xff]
    %v317 = vld [vmem:[#allocation8 + $0xf8] sm:$0xff]
    %v318 = vld [vmem:[%s6] sm:$0x1]
    %v320 = vlaneseq
    %v321 = vshrl.u32 %v320, 7
    %v322 = vsub.s32 0, %v321
    %v323 = vrot.slane %v318, %v322
    %325 = vmatprep.subr.mxu0 0.0
    %326 = vmatpush1.msra.mxu0 %v286
    %327 = vmatprep.subr.mxu0 0.0
    %328 = vmatpush1.msra.mxu0 %v287
    %329 = vmatprep.subr.mxu0 0.0
    %330 = vmatpush1.msra.mxu0 %v288
    %331 = vmatprep.subr.mxu0 0.0
    %332 = vmatpush1.msra.mxu0 %v289
    %333 = vmatprep.subr.mxu0 0.0
    %334 = vmatpush1.msra.mxu0 %v290
    %335 = vmatprep.subr.mxu0 0.0
    %336 = vmatpush1.msra.mxu0 %v291
    %337 = vmatprep.subr.mxu0 0.0
    %338 = vmatpush1.msra.mxu0 %v292
    %339 = vmatprep.subr.mxu0 0.0
    %340 = vmatpush1.msra.mxu0 %v293
    %341 = vmatprep.subr.mxu0 0.0
    %342 = vmatpush1.msra.mxu0 %v294
    %343 = vmatprep.subr.mxu0 0.0
    %344 = vmatpush1.msra.mxu0 %v295
    %345 = vmatprep.subr.mxu0 0.0
    %346 = vmatpush1.msra.mxu0 %v296
    %347 = vmatprep.subr.mxu0 0.0
    %348 = vmatpush1.msra.mxu0 %v297
    %349 = vmatprep.subr.mxu0 0.0
    %350 = vmatpush1.msra.mxu0 %v298
    %351 = vmatprep.subr.mxu0 0.0
    %352 = vmatpush1.msra.mxu0 %v299
    %353 = vmatprep.subr.mxu0 0.0
    %354 = vmatpush1.msra.mxu0 %v300
    %355 = vmatprep.subr.mxu0 0.0
    %356 = vmatpush1.msra.mxu0 %v301
    %357 = vmatprep.subr.mxu0 0.0
    %358 = vmatpush1.msra.mxu0 %v302
    %359 = vmatprep.subr.mxu0 0.0
    %360 = vmatpush1.msra.mxu0 %v303
    %361 = vmatprep.subr.mxu0 0.0
    %362 = vmatpush1.msra.mxu0 %v304
    %363 = vmatprep.subr.mxu0 0.0
    %364 = vmatpush1.msra.mxu0 %v305
    %365 = vmatprep.subr.mxu0 0.0
    %366 = vmatpush1.msra.mxu0 %v306
    %367 = vmatprep.subr.mxu0 0.0
    %368 = vmatpush1.msra.mxu0 %v307
    %369 = vmatprep.subr.mxu0 0.0
    %370 = vmatpush1.msra.mxu0 %v308
    %371 = vmatprep.subr.mxu0 0.0
    %372 = vmatpush1.msra.mxu0 %v309
    %373 = vmatprep.subr.mxu0 0.0
    %374 = vmatpush1.msra.mxu0 %v310
    %375 = vmatprep.subr.mxu0 0.0
    %376 = vmatpush1.msra.mxu0 %v311
    %377 = vmatprep.subr.mxu0 0.0
    %378 = vmatpush1.msra.mxu0 %v312
    %379 = vmatprep.subr.mxu0 0.0
    %380 = vmatpush1.msra.mxu0 %v313
    %381 = vmatprep.subr.mxu0 0.0
    %382 = vmatpush1.msra.mxu0 %v314
    %383 = vmatprep.subr.mxu0 0.0
    %384 = vmatpush1.msra.mxu0 %v315
    %385 = vmatprep.subr.mxu0 0.0
    %386 = vmatpush1.msra.mxu0 %v316
    %387 = vmatprep.subr.mxu0 0.0
    %388 = vmatpush1.msra.mxu0 %v317
    %389 = vmatprep.mubr.f32.mxu0 %v285
    %390 = vmatmul.mubr.f32.gmra.mrb[0].mxu0 %v284
    %v391 = vpop.f32.mrb[0].mxu0
    %v392 = vadd.f32 %v323, %v391
    %v393 = vpop.f32.mrb[0].mxu0
    %394 = vdwg.mxu0
    %v395 = vlaneseq
    %v396 = vshrl.u32 %v395, 7
    %v397 = vlaneseq
    %v398 = vand.u32 %v397, 127
    %vm399 = vcmp.lt.s32.totalorder %v396, 2
    %vm400 = vcmp.lt.s32.totalorder %v398, 8
    %vm401 = vmand %vm399, %vm400
    %v402 = vsel %vm401, %v392, 0.0
    %403 = vadd.xlane.f32.xlu0 %v402
    %v404 = vpop.xlane.xlu0 %403
    %v405 = vrot.slane %v404, 4
    %v406 = vadd.f32 %v404, %v405
    %v407 = vrot.slane %v406, 2
    %v408 = vadd.f32 %v406, %v407
    %v409 = vrot.slane %v408, 1
    %v410 = vadd.f32 %v408, %v409
    %s411 = vtos %v410
    %s412 = smul.f32 %s411, 0.0625
    %vm413 = vcmp.eq.s32.totalorder %v398, 8
    %v414 = vsel %vm413, %v392, 0.0
    %415 = vadd.xlane.f32.xlu0 %v414
    %v416 = vpop.xlane.xlu0 %415
    %v417 = vadd.f32 %v392, %v416
    %v418 = vstv %s412
    %v419 = vsub.f32 %v417, %v418
    %420 = vst [vmem:[#allocation10] sm:$0xff] %v419
    // Predicated region
    $region46: #{tpu_custom_call.1} parent=1 // pred_check
      _
    $region47: #{tpu_custom_call.1} parent=1 // pred_check_branch
      %422 = sbr.rel (0) target = $region49
    $region48: #{tpu_custom_call.1} parent=1 // pred_region
      %s424 = ssub.s32 128, 32
      %425 = vsyncadd [#allocation4], %s424
      %s426 = sshll.u32 [#allocation10], 4
      %s427 = int_to_ptr.vmem [resolvable:$true] %s426
      %432 = dma.vmem_to_hbm [thread:$0]  %s427, 32, %s7, [#allocation4], 32, 32, 2
    $region49: #{tpu_custom_call.1} parent=1 // pred_fallthru
      _
    // Predicated region
    $region50: #{tpu_custom_call.1} parent=1 // pred_check
      _
    $region51: #{tpu_custom_call.1} parent=1 // pred_check_branch
      %434 = sbr.rel (0) target = $region53
    $region52: #{tpu_custom_call.1} parent=1 // pred_region
      %435 = dma.done [#allocation4], 128
    $region53: #{tpu_custom_call.1} parent=1 // pred_fallthru
      _
    %436 = vsyncpa [#allocation3], 1
    %437 = vsyncpa [#allocation6], 1
    %438 = vsyncpa [#allocation9], 1
    %439 = vsyncpa [#allocation4], 1

</llo_original>
